<compile_context>
chip_gen: v6e
topology: v6e:2x2x1
jax: 0.10.0
libtpu: 0.0.40
codegen_flags: <defaults>
</compile_context>

<pallas_src>
import functools

import jax
import jax.numpy as jnp
from jax.experimental import pallas as pl
from jax.experimental.pallas import tpu as pltpu


def _round_up(x, m):
    return ((x + m - 1) // m) * m


def _vmem_caps():
    """(tile-sizing budget, vmem_limit_bytes), generation aware."""
    try:
        cap = int(pltpu.get_tpu_info().vmem_capacity_bytes)
    except Exception:
        cap = 64 * 1024 * 1024          # unknown chip -> size like v7x (safe)
    if cap >= 96 * 1024 * 1024:         # v5e / v6e: 128 MiB physical
        return 96 * 1024 * 1024, 112 * 1024 * 1024
    return 40 * 1024 * 1024, 52 * 1024 * 1024   # v7x: 64 MiB physical


def _choose_tiles(n, d_in_p, d_out_p, w_bytes, x_bytes, budget):
    """Pick (tile_n, tile_k) for pass A against the VMEM budget.

    W has a constant index_map when it fits, so it is SINGLE-buffered and only
    one copy is charged.  Otherwise fall back to streaming (tile_k, d_out_p)
    W slabs (double-buffered) along a K grid axis.
    """
    vec_bytes = 4 * d_out_p * 4
    w_full = d_in_p * d_out_p * w_bytes
    if w_full + vec_bytes <= budget // 2:
        tile_k = d_in_p
        w_resident = w_full
    else:
        # TODO(synk): also tile D_out for layers where even a (128, d_out_p)
        # W slab overflows the v7x budget.
        tk_max = max(128, ((budget // 2) // (2 * d_out_p * w_bytes)) // 128 * 128)
        tk_max = min(tk_max, d_in_p)
        nk = -(-d_in_p // tk_max)
        tile_k = _round_up(-(-d_in_p // nk), 128)
        w_resident = 2 * tile_k * d_out_p * w_bytes
    # double-buffered X tile + double-buffered f32 y tile, per batch row
    per_row = 2 * tile_k * x_bytes + 2 * d_out_p * 4
    avail = max(budget - w_resident - vec_bytes, 16 * per_row)
    rows = avail // per_row
    granule = 128 if n >= 128 else 16        # full MXU M-dim tiles when N allows
    tile_n = int(min(rows, max(_round_up(n, granule), granule), 4096))
    tile_n = max(granule, (tile_n // granule) * granule)
    return tile_n, tile_k


def _choose_apply_tile(total_tiles, tile_n, d_out_p, out_bytes, budget):
    """Largest multiple of tile_n dividing n_pad that fits the budget.

    Pass B has no W resident, so its tiles can be much larger than pass A's;
    keep >= 2 grid steps when possible so v7x can still split it across cores.
    """
    per_row = 2 * d_out_p * 4 + 2 * d_out_p * out_bytes
    max_rows = min(max(tile_n, (budget - 4 * d_out_p * 4) // per_row), 8192)
    max_f = total_tiles if total_tiles < 2 else max(1, total_tiles // 2)
    for f in range(max_f, 0, -1):
        if total_tiles % f == 0 and f * tile_n <= max_rows:
            return f * tile_n
    return tile_n


def _linear_stats_kernel(x_ref, w_ref, y_ref, sum_ref, sumsq_ref, *, compute_dtype):
    # grid = (core_split, n_tiles_per_split, k_tiles); K is innermost.
    k = pl.program_id(2)

    part = jnp.dot(x_ref[...].astype(compute_dtype), w_ref[...],
                   preferred_element_type=jnp.float32)

    # y doubles as the K-reduction accumulator: its block index is constant
    # over k, so it stays VMEM-resident and is written back to HBM once.
    @pl.when(k == 0)
    def _():
        y_ref[...] = part

    @pl.when(k > 0)
    def _():
        y_ref[...] += part

    @pl.when((pl.program_id(1) == 0) & (k == 0))
    def _():
        sum_ref[...] = jnp.zeros_like(sum_ref)
        sumsq_ref[...] = jnp.zeros_like(sumsq_ref)

    @pl.when(k == pl.num_programs(2) - 1)
    def _():
        # Padded batch rows are exact zeros (zero X rows, no bias in-kernel),
        # so they contribute nothing to the sums -> no row masking needed.
        y = y_ref[...]
        sum_ref[...] += jnp.sum(y, axis=0, keepdims=True)[None]
        sumsq_ref[...] += jnp.sum(y * y, axis=0, keepdims=True)[None]


def _bn_act_kernel(y_ref, scale_ref, shift_ref, o_ref, *, neg_slope):
    z = y_ref[...] * scale_ref[...] + shift_ref[...]
    o_ref[...] = jnp.where(z >= 0, z, neg_slope * z).astype(o_ref.dtype)   # LeakyReLU


def encoder_base_forward(x, w_t, b=None, gamma=None, beta=None, *,
                         tile_n=None, tile_k=None,
                         compute_dtype=jnp.bfloat16, out_dtype=jnp.float32,
                         eps=1e-5, neg_slope=0.01):
    """LeakyReLU(BatchNorm1d(Linear(x))) with training-mode (batch) statistics.

    x: (N, D_in) f32; w_t: (D_in, D_out); b/gamma/beta: (D_out,) or (1, D_out).
    The Linear bias `b` provably cancels under training-mode BatchNorm (mean
    subtraction removes it from the forward output) so it never enters the
    kernels; it is accepted only for API parity.
    """
    del b
    n, d_in = x.shape
    d_out = w_t.shape[1]
    gamma = (jnp.ones((1, d_out), jnp.float32) if gamma is None
             else jnp.asarray(gamma, jnp.float32).reshape(1, -1))
    beta = (jnp.zeros((1, d_out), jnp.float32) if beta is None
            else jnp.asarray(beta, jnp.float32).reshape(1, -1))

    d_in_p = _round_up(d_in, 128)
    d_out_p = _round_up(d_out, 128)
    w_bytes = jnp.dtype(compute_dtype).itemsize
    budget, vmem_limit = _vmem_caps()

    auto_tn, auto_tk = _choose_tiles(n, d_in_p, d_out_p, w_bytes, 4, budget)
    tile_n = auto_tn if tile_n is None else max(16, _round_up(int(tile_n), 16))
    tile_k = auto_tk if tile_k is None else max(128, (int(tile_k) // 128) * 128)
    tile_k = min(tile_k, d_in_p)
    if d_in_p % tile_k:
        d_in_p = _round_up(d_in_p, tile_k)
    k_tiles = d_in_p // tile_k

    total_tiles = pl.cdiv(n, tile_n)
    # Leading "parallel" axis of size 2 lets v7x split the batch reduction
    # across its two TensorCores (per-core partial stats, combined below);
    # it is a no-op on single-core v5e/v6e.
    splits = 2 if total_tiles >= 2 else 1
    tiles_per_split = pl.cdiv(total_tiles, splits)
    total_tiles = splits * tiles_per_split
    n_pad = total_tiles * tile_n

    # Skip the host-side pad/cast HBM pass over X when the shape already
    # conforms; the kernel casts to compute_dtype right before the MXU anyway.
    if n_pad == n and d_in_p == d_in:
        xp = x
    else:
        xp = jnp.pad(x, ((0, n_pad - n), (0, d_in_p - d_in))).astype(compute_dtype)
    wp = jnp.pad(jnp.asarray(w_t, jnp.float32),
                 ((0, d_in_p - d_in), (0, d_out_p - d_out))).astype(compute_dtype)
    gp = jnp.pad(gamma, ((0, 0), (0, d_out_p - d_out)))
    betap = jnp.pad(beta, ((0, 0), (0, d_out_p - d_out)))

    x_spec = pl.BlockSpec((tile_n, tile_k),
                          lambda c, i, k: (c * tiles_per_split + i, k))
    if k_tiles == 1:
        # Grid-invariant W: fetched once, kept VMEM-resident, single-buffered.
        w_spec = pl.BlockSpec((tile_k, d_out_p), lambda c, i, k: (0, 0),
                              pipeline_mode=pl.Buffered(1))
    else:
        w_spec = pl.BlockSpec((tile_k, d_out_p), lambda c, i, k: (k, 0))
    y_spec = pl.BlockSpec((tile_n, d_out_p),
                          lambda c, i, k: (c * tiles_per_split + i, 0))
    stat_spec = pl.BlockSpec((1, 1, d_out_p), lambda c, i, k: (c, 0, 0))

    # Pass A: y = x @ W (written to HBM once, f32) + per-core batch statistics.
    y, psum, psumsq = pl.pallas_call(
        functools.partial(_linear_stats_kernel, compute_dtype=compute_dtype),
        out_shape=(jax.ShapeDtypeStruct((n_pad, d_out_p), jnp.float32),
                   jax.ShapeDtypeStruct((splits, 1, d_out_p), jnp.float32),
                   jax.ShapeDtypeStruct((splits, 1, d_out_p), jnp.float32)),
        grid_spec=pltpu.PrefetchScalarGridSpec(
            num_scalar_prefetch=0,
            grid=(splits, tiles_per_split, k_tiles),
            in_specs=[x_spec, w_spec],
            out_specs=(y_spec, stat_spec, stat_spec)),
        compiler_params=pltpu.CompilerParams(
            dimension_semantics=("parallel", "arbitrary", "arbitrary"),
            vmem_limit_bytes=vmem_limit),
    )(xp, wp)

    # Tiny (1, D_out) epilogue in plain XLA: combine per-core partials, fold BN
    # into one affine.  Biased variance = PyTorch training-mode normalization;
    # the clamp guards f32 rounding, and dropping the bias from the sums also
    # reduces E[y^2]-E[y]^2 cancellation.
    # TODO(synk): pivoted / Welford merge for extreme input scales.
    inv_n = 1.0 / n
    mean = jnp.sum(psum, axis=0) * inv_n                 # (1, d_out_p)
    var = jnp.maximum(jnp.sum(psumsq, axis=0) * inv_n - mean * mean, 0.0)
    inv_std = jax.lax.rsqrt(var + eps)                   # EUP rsqrt
    scale = gp * inv_std
    shift = betap - mean * scale

    # Pass B: pure element-wise normalize + LeakyReLU on larger N-tiles.
    tile_b = _choose_apply_tile(total_tiles, tile_n, d_out_p,
                                jnp.dtype(out_dtype).itemsize, budget)
    y_b_spec = pl.BlockSpec((tile_b, d_out_p), lambda i: (i, 0))
    vec_spec = pl.BlockSpec((1, d_out_p), lambda i: (0, 0),
                            pipeline_mode=pl.Buffered(1))
    out_p = pl.pallas_call(
        functools.partial(_bn_act_kernel, neg_slope=neg_slope),
        out_shape=jax.ShapeDtypeStruct((n_pad, d_out_p), out_dtype),
        grid_spec=pltpu.PrefetchScalarGridSpec(
            num_scalar_prefetch=0,
            grid=(n_pad // tile_b,),
            in_specs=[y_b_spec, vec_spec, vec_spec],
            out_specs=pl.BlockSpec((tile_b, d_out_p), lambda i: (i, 0))),
        compiler_params=pltpu.CompilerParams(
            dimension_semantics=("parallel",),
            vmem_limit_bytes=vmem_limit),
    )(y, scale, shift)

    return out_p[:n, :d_out]


def init_params(key, layer_in, layer_out):
    """Deterministic init matching EncoderBase.__init__ shapes/statistics."""
    k_w, k_b = jax.random.split(key)
    # kaiming_uniform_(a=0.01, nonlinearity='leaky_relu')
    a = 0.01
    gain = (2.0 / (1.0 + a * a)) ** 0.5
    bound_w = gain * (3.0 / layer_in) ** 0.5
    w = jax.random.uniform(k_w, (layer_out, layer_in), jnp.float32, -bound_w, bound_w)
    # nn.Linear default bias init
    bound_b = 1.0 / (layer_in ** 0.5)
    b = jax.random.uniform(k_b, (1, layer_out), jnp.float32, -bound_b, bound_b)
    gamma = jnp.ones((1, layer_out), jnp.float32)
    beta = jnp.zeros((1, layer_out), jnp.float32)
    return w.T, b, gamma, beta          # weight pre-transposed to (D_in, D_out)


if __name__ == "__main__":
    key = jax.random.PRNGKey(0)

    def reference(x, w_t, b, gamma, beta, eps=1e-5, neg_slope=0.01):
        # Same bf16 MXU operands + f32 accumulation as the kernel; training-mode
        # BatchNorm (biased variance); LeakyReLU(0.01).
        y = jnp.dot(x.astype(jnp.bfloat16), w_t.astype(jnp.bfloat16),
                    preferred_element_type=jnp.float32) + b
        mean = y.mean(axis=0, keepdims=True)
        var = ((y - mean) ** 2).mean(axis=0, keepdims=True)
        y = (y - mean) * jax.lax.rsqrt(var + eps) * gamma + beta
        return jnp.where(y >= 0, y, neg_slope * y)

    # (batch, d_in, d_out, tile_n, tile_k): the first config exercises feature
    # padding, N padding + the 2-way core split; the second exercises the
    # aligned no-pad path (in-kernel f32->bf16 cast) and K-tiling (k_tiles=2).
    configs = [
        (72, 48, 80, 32, None),
        (128, 256, 128, 64, 128),
    ]
    for batch, layer_in, layer_out, tn, tk in configs:
        k_x, k_p, key = jax.random.split(key, 3)
        x = jax.random.normal(k_x, (batch, layer_in), jnp.float32)
        w_t, b, gamma, beta = init_params(k_p, layer_in, layer_out)

        out = encoder_base_forward(x, w_t, b, gamma, beta, tile_n=tn, tile_k=tk)
        jax.block_until_ready(out)
        assert out.shape == (batch, layer_out)

        y_ref = reference(x, w_t, b, gamma, beta)
        err = float(jnp.max(jnp.abs(out - y_ref)))
        assert jnp.allclose(out, y_ref, atol=1e-3, rtol=1e-3), err

    print("KERNEL_OK")
</pallas_src>

<mosaic_0001>
module attributes {stable_mosaic.version = 11 : i64} {
  func.func @_linear_stats_kernel(%arg0: i32, %arg1: i32, %arg2: i32, %arg3: memref<32x128xbf16, #tpu.memory_space<vmem>>, %arg4: memref<128x128xbf16, #tpu.memory_space<vmem>>, %arg5: memref<32x128xf32, #tpu.memory_space<vmem>>, %arg6: memref<1x1x128xf32, #tpu.memory_space<vmem>>, %arg7: memref<1x1x128xf32, #tpu.memory_space<vmem>>) attributes {dimension_semantics = [#tpu.dimension_semantics<parallel>, #tpu.dimension_semantics<arbitrary>, #tpu.dimension_semantics<arbitrary>], iteration_bounds = array<i64: 2, 2, 1>, scalar_prefetch = 0 : i64, scratch_operands = 0 : i64, tpu.core_type = #tpu.core_type<tc>, window_params = [{transform_indices = @transform_0, window_bounds = array<i64: 32, 128>}, {pipeline_mode = #tpu.pipeline_mode<synchronous>, transform_indices = @transform_1, window_bounds = array<i64: 128, 128>}, {transform_indices = @transform_2, window_bounds = array<i64: 32, 128>}, {transform_indices = @transform_3, window_bounds = array<i64: 1, 1, 128>}, {transform_indices = @transform_4, window_bounds = array<i64: 1, 1, 128>}]} {
    %c0 = arith.constant 0 : index
    %c0_0 = arith.constant 0 : index
    %0 = vector.load %arg3[%c0, %c0_0] : memref<32x128xbf16, #tpu.memory_space<vmem>>, vector<32x128xbf16>
    %c0_1 = arith.constant 0 : index
    %c0_2 = arith.constant 0 : index
    %1 = vector.load %arg4[%c0_1, %c0_2] : memref<128x128xbf16, #tpu.memory_space<vmem>>, vector<128x128xbf16>
    %cst = arith.constant dense<0.000000e+00> : vector<32x128xf32>
    %2 = tpu.matmul %0, %1, %cst {dimension_numbers = #tpu.dot_dimension_numbers<[1], [0], [0], [1], [0, 0, 1, 1], [], []>} : vector<32x128xbf16>, vector<128x128xbf16>, vector<32x128xf32> -> vector<32x128xf32>
    %c0_i32 = arith.constant 0 : i32
    %3 = arith.cmpi eq, %arg2, %c0_i32 : i32
    %4 = arith.extui %3 : i1 to i32
    %c0_i32_3 = arith.constant 0 : i32
    %5 = arith.cmpi ne, %4, %c0_i32_3 : i32
    scf.if %5 {
      %c0_11 = arith.constant 0 : index
      %c0_12 = arith.constant 0 : index
      %17 = vector.load %arg5[%c0_11, %c0_12] : memref<32x128xf32, #tpu.memory_space<vmem>>, vector<32x128xf32>
      tpu.vector_store %arg5[%c0_11, %c0_12], %2 {strides = array<i32>} : memref<32x128xf32, #tpu.memory_space<vmem>>, vector<32x128xf32>,
    } else {
    }
    %c0_i32_4 = arith.constant 0 : i32
    %6 = arith.cmpi sgt, %arg2, %c0_i32_4 : i32
    %7 = arith.extui %6 : i1 to i32
    %c0_i32_5 = arith.constant 0 : i32
    %8 = arith.cmpi ne, %7, %c0_i32_5 : i32
    scf.if %8 {
      %c0_11 = arith.constant 0 : index
      %c0_12 = arith.constant 0 : index
      %17 = vector.load %arg5[%c0_11, %c0_12] : memref<32x128xf32, #tpu.memory_space<vmem>>, vector<32x128xf32>
      %18 = arith.addf %17, %2 : vector<32x128xf32>
      %c0_13 = arith.constant 0 : index
      %c0_14 = arith.constant 0 : index
      %19 = vector.load %arg5[%c0_13, %c0_14] : memref<32x128xf32, #tpu.memory_space<vmem>>, vector<32x128xf32>
      tpu.vector_store %arg5[%c0_13, %c0_14], %18 {strides = array<i32>} : memref<32x128xf32, #tpu.memory_space<vmem>>, vector<32x128xf32>,
    } else {
    }
    %c0_i32_6 = arith.constant 0 : i32
    %9 = arith.cmpi eq, %arg1, %c0_i32_6 : i32
    %c0_i32_7 = arith.constant 0 : i32
    %10 = arith.cmpi eq, %arg2, %c0_i32_7 : i32
    %11 = arith.andi %9, %10 : i1
    %12 = arith.extui %11 : i1 to i32
    %c0_i32_8 = arith.constant 0 : i32
    %13 = arith.cmpi ne, %12, %c0_i32_8 : i32
    scf.if %13 {
      %cst_11 = arith.constant 0.000000e+00 : f32
      %17 = vector.broadcast %cst_11 : f32 to vector<1x1x128xf32>
      %c0_12 = arith.constant 0 : index
      %c0_13 = arith.constant 0 : index
      %c0_14 = arith.constant 0 : index
      %18 = vector.load %arg6[%c0_12, %c0_13, %c0_14] : memref<1x1x128xf32, #tpu.memory_space<vmem>>, vector<1x1x128xf32>
      tpu.vector_store %arg6[%c0_12, %c0_13, %c0_14], %17 {strides = array<i32>} : memref<1x1x128xf32, #tpu.memory_space<vmem>>, vector<1x1x128xf32>,
      %cst_15 = arith.constant 0.000000e+00 : f32
      %19 = vector.broadcast %cst_15 : f32 to vector<1x1x128xf32>
      %c0_16 = arith.constant 0 : index
      %c0_17 = arith.constant 0 : index
      %c0_18 = arith.constant 0 : index
      %20 = vector.load %arg7[%c0_16, %c0_17, %c0_18] : memref<1x1x128xf32, #tpu.memory_space<vmem>>, vector<1x1x128xf32>
      tpu.vector_store %arg7[%c0_16, %c0_17, %c0_18], %19 {strides = array<i32>} : memref<1x1x128xf32, #tpu.memory_space<vmem>>, vector<1x1x128xf32>,
    } else {
    }
    %c0_i32_9 = arith.constant 0 : i32
    %14 = arith.cmpi eq, %arg2, %c0_i32_9 : i32
    %15 = arith.extui %14 : i1 to i32
    %c0_i32_10 = arith.constant 0 : i32
    %16 = arith.cmpi ne, %15, %c0_i32_10 : i32
    scf.if %16 {
      %c0_11 = arith.constant 0 : index
      %c0_12 = arith.constant 0 : index
      %17 = vector.load %arg5[%c0_11, %c0_12] : memref<32x128xf32, #tpu.memory_space<vmem>>, vector<32x128xf32>
      %c0_13 = arith.constant 0 : index
      %c0_14 = arith.constant 0 : index
      %c0_15 = arith.constant 0 : index
      %18 = vector.load %arg6[%c0_13, %c0_14, %c0_15] : memref<1x1x128xf32, #tpu.memory_space<vmem>>, vector<1x1x128xf32>
      %cst_16 = arith.constant dense<0.000000e+00> : vector<128xf32>
      %19 = vector.multi_reduction <add>, %17, %cst_16 [0] : vector<32x128xf32> to vector<128xf32>
      %20 = vector.shape_cast %19 : vector<128xf32> to vector<1x128xf32>
      %21 = vector.shape_cast %20 : vector<1x128xf32> to vector<1x1x128xf32>
      %22 = arith.addf %18, %21 : vector<1x1x128xf32>
      %c0_17 = arith.constant 0 : index
      %c0_18 = arith.constant 0 : index
      %c0_19 = arith.constant 0 : index
      %23 = vector.load %arg6[%c0_17, %c0_18, %c0_19] : memref<1x1x128xf32, #tpu.memory_space<vmem>>, vector<1x1x128xf32>
      tpu.vector_store %arg6[%c0_17, %c0_18, %c0_19], %22 {strides = array<i32>} : memref<1x1x128xf32, #tpu.memory_space<vmem>>, vector<1x1x128xf32>,
      %c0_20 = arith.constant 0 : index
      %c0_21 = arith.constant 0 : index
      %c0_22 = arith.constant 0 : index
      %24 = vector.load %arg7[%c0_20, %c0_21, %c0_22] : memref<1x1x128xf32, #tpu.memory_space<vmem>>, vector<1x1x128xf32>
      %25 = arith.mulf %17, %17 : vector<32x128xf32>
      %cst_23 = arith.constant dense<0.000000e+00> : vector<128xf32>
      %26 = vector.multi_reduction <add>, %25, %cst_23 [0] : vector<32x128xf32> to vector<128xf32>
      %27 = vector.shape_cast %26 : vector<128xf32> to vector<1x128xf32>
      %28 = vector.shape_cast %27 : vector<1x128xf32> to vector<1x1x128xf32>
      %29 = arith.addf %24, %28 : vector<1x1x128xf32>
      %c0_24 = arith.constant 0 : index
      %c0_25 = arith.constant 0 : index
      %c0_26 = arith.constant 0 : index
      %30 = vector.load %arg7[%c0_24, %c0_25, %c0_26] : memref<1x1x128xf32, #tpu.memory_space<vmem>>, vector<1x1x128xf32>
      tpu.vector_store %arg7[%c0_24, %c0_25, %c0_26], %29 {strides = array<i32>} : memref<1x1x128xf32, #tpu.memory_space<vmem>>, vector<1x1x128xf32>,
    } else {
    }
    return
  }
  func.func @transform_0(%arg0: i32, %arg1: i32, %arg2: i32) -> (i32, i32) {
    %c2_i32 = arith.constant 2 : i32
    %0 = arith.muli %arg0, %c2_i32 : i32
    %1 = arith.addi %0, %arg1 : i32
    %c0_i32 = arith.constant 0 : i32
    return %1, %arg2 : i32, i32
  }
  func.func @transform_1(%arg0: i32, %arg1: i32, %arg2: i32) -> (i32, i32) {
    %c0_i32 = arith.constant 0 : i32
    %c0_i32_0 = arith.constant 0 : i32
    %c0_i32_1 = arith.constant 0 : i32
    return %c0_i32, %c0_i32_0 : i32, i32
  }
  func.func @transform_2(%arg0: i32, %arg1: i32, %arg2: i32) -> (i32, i32) {
    %c2_i32 = arith.constant 2 : i32
    %0 = arith.muli %arg0, %c2_i32 : i32
    %1 = arith.addi %0, %arg1 : i32
    %c0_i32 = arith.constant 0 : i32
    %c0_i32_0 = arith.constant 0 : i32
    return %1, %c0_i32 : i32, i32
  }
  func.func @transform_3(%arg0: i32, %arg1: i32, %arg2: i32) -> (i32, i32, i32) {
    %c0_i32 = arith.constant 0 : i32
    %c0_i32_0 = arith.constant 0 : i32
    %c0_i32_1 = arith.constant 0 : i32
    return %arg0, %c0_i32, %c0_i32_0 : i32, i32, i32
  }
  func.func @transform_4(%arg0: i32, %arg1: i32, %arg2: i32) -> (i32, i32, i32) {
    %c0_i32 = arith.constant 0 : i32
    %c0_i32_0 = arith.constant 0 : i32
    %c0_i32_1 = arith.constant 0 : i32
    return %arg0, %c0_i32, %c0_i32_0 : i32, i32, i32
  }
}

</mosaic_0001>

<llo_original>
// kernel: tpu_custom_call.1
$region0: #{tpu_custom_call.1}
  #allocation0 [shape = 'u32[]', space=smem, size = 0x4, offset = 0x4, fixed_abs, tag = 'smem constant byte address 0x4 - core index']
  #allocation1 [shape = 'u32[144,128]{1,0:T(1,128)}', space=vmem, size = 0x12000, scoped, tag = 'internal scratch']
  %s0 = inlined_call_operand.hbm [shape: bf16[128,128], index: 0, kind: input, shape index: {}]
  %s1 = inlined_call_operand.hbm [shape: bf16[128,128], index: 1, kind: input, shape index: {}]
  %s2 = inlined_call_operand.hbm [shape: f32[128,128], index: 2, kind: output, shape index: {0}]
  %s3 = inlined_call_operand.hbm [shape: f32[2,1,128], index: 3, kind: output, shape index: {1}]
  %s4 = inlined_call_operand.hbm [shape: f32[2,1,128], index: 4, kind: output, shape index: {2}]
  %5 = xla_tuple %s2, %s3, %s4
  %s6 = sld [smem:[#allocation0]]
  $region81: #{tpu_custom_call.1} parent=0
    _
  %s8 = ssub.s32 1, %s6
  %s9 = scalar_select 0, %s8, %s6
  $region1: #{tpu_custom_call.1} parent=0
    #allocation2 [shape = 'u8[16384]{0}', space=vmem, size = 0x4000, scoped, tag = 'input window, operand 0']
    #allocation3 [shape = 's32[2]{0}', space=sflag, size = 0x8, scoped, tag = 'scoped memory for tpu_custom_call.1']
    #allocation4 [shape = 's32[2]{0}', space=sflag, size = 0x8, scoped, tag = 'scoped memory for tpu_custom_call.1']
    #allocation5 [shape = 'u8[32768]{0}', space=vmem, size = 0x8000, scoped, tag = 'input window, operand 1, single buffered']
    #allocation6 [shape = 's32[1]{0}', space=sflag, size = 0x4, scoped, tag = 'scoped memory for tpu_custom_call.1']
    #allocation7 [shape = 'u8[32768]{0}', space=vmem, size = 0x8000, scoped, tag = 'output window, operand 0']
    #allocation8 [shape = 'u8[1024]{0}', space=vmem, size = 0x400, scoped, tag = 'output window, operand 1']
    #allocation9 [shape = 's32[2]{0}', space=sflag, size = 0x8, scoped, tag = 'scoped memory for tpu_custom_call.1']
    #allocation10 [shape = 'u8[1024]{0}', space=vmem, size = 0x400, scoped, tag = 'output window, operand 2']
    %10 = vsyncpa [#allocation3], 0
    %s11 = scalar_lea.sflag [#allocation3], 1
    %12 = vsyncpa %s11, 0
    %13 = vsyncpa [#allocation6], 0
    %14 = vsyncpa [#allocation4], 0
    %s15 = scalar_lea.sflag [#allocation4], 1
    %16 = vsyncpa %s15, 0
    %17 = vsyncpa [#allocation9], 0
    %s18 = scalar_lea.sflag [#allocation9], 1
    %19 = vsyncpa %s18, 0
    loop: start=0, step=1, limit=6
    $region2: #{tpu_custom_call.1} parent=1 // loop_pre_header
      _
    $region3: #{tpu_custom_call.1} parent=1 // loop_header
      %s21 = sphi 0, %s25
      %p22 = scmp.ge.s32.totalorder %s21, 6
      %s28 = sphi 0, %s47
      %s29 = sphi 0, %s43
      %s30 = sphi 0, %s39
      %s31 = sphi 0, %s28
      %s32 = sphi 0, %s29
      %s33 = sphi 0, %s30
      %s34 = sphi 0, %s31
      %s35 = sphi 0, %s32
      %s36 = sphi 0, %s33
      %s56 = sphi 0, %s58
      %s59 = sphi 0, %s56
      %s60 = sphi 0, %s59
      %s76 = sphi 0, %s60
      %s80 = sphi 0, %s80
      %s82 = sphi 0, %s80
      %s83 = sphi 0, %s82
      %s97 = sphi 0, %s83
      %s107 = sphi 0, %s109
      %s110 = sphi 0, %s107
      %s111 = sphi 0, %s110
      %s127 = sphi 0, %s111
      %s133 = sphi 0, %s135
      %s136 = sphi 0, %s133
      %s137 = sphi 0, %s136
      %s153 = sphi 0, %s137
      %s159 = sphi 0, %s161
      %s162 = sphi 0, %s159
      %s163 = sphi 0, %s162
      %s179 = sphi 0, %s163
    $region4: #{tpu_custom_call.1} parent=1 // loop_header_branch
      %24 = sbr.rel (%p22) target = $region8
    $region5: #{tpu_custom_call.1} parent=1 // loop_body
      %s26 = ssub.s32 %s21, 1
      %s27 = ssub.s32 %s21, 2
      %s37 = sadd.s32 1, %s30
      %p38 = scmp.ge.s32.totalorder %s37, 1
      %s39 = scalar_select %p38, 0, %s37
      %s40 = sadd.s32 1, %s29
      %s41 = scalar_select %p38, %s40, %s29
      %p42 = scmp.ge.s32.totalorder %s41, 2
      %s43 = scalar_select %p42, 0, %s41
      %s44 = sadd.s32 1, %s28
      %s45 = scalar_select %p42, %s44, %s28
      %p46 = scmp.ge.s32.totalorder %s45, 2
      %s47 = scalar_select %p46, 0, %s45
      %s48 = smul.u32 %s28, 2
      %s49 = sadd.s32 %s48, %s29
      %s50 = smul.u32 %s47, 2
      %s51 = sadd.s32 %s50, %s43
      %s52 = ssub.s32 %s49, %s51
      %s53 = ssub.s32 %s30, %s39
      %s54 = sor.u32 %s52, %s53
      %p55 = scmp.eq.s32.totalorder %s54, 0
      %s57 = sadd.s32 %s56, 1
      %s58 = scalar_select %p55, %s56, %s57
      %p61 = pneg %p55
      %p62 = scmp.eq.s32.totalorder %s21, 3
      %p63 = por %p61, %p62
      %p64 = scmp.ne.s32.totalorder %s56, %s59
      %p65 = scmp.eq.s32.totalorder %s21, 0
      %p66 = por %p64, %p65
      %p67 = scmp.ne.s32.totalorder %s56, %s59
      %p68 = scmp.eq.s32.totalorder %s26, 3
      %p69 = por %p67, %p68
      %p70 = scmp.ne.s32.totalorder %s59, %s60
      %p71 = scmp.eq.s32.totalorder %s26, 0
      %p72 = por %p70, %p71
      %p73 = scmp.ne.s32.totalorder %s59, %s60
      %p74 = scmp.eq.s32.totalorder %s27, 3
      %p75 = por %p73, %p74
      %p77 = scmp.ne.s32.totalorder %s60, %s76
      %p78 = scmp.eq.s32.totalorder %s27, 0
      %p79 = por %p77, %p78
      %s81 = sadd.s32 %s80, 1
      %p84 = scmp.eq.s32.totalorder %s21, 3
      %p85 = scmp.ne.s32.totalorder %s80, %s82
      %p86 = scmp.eq.s32.totalorder %s21, 0
      %p87 = por %p85, %p86
      %p88 = scmp.ne.s32.totalorder %s80, %s82
      %p89 = scmp.eq.s32.totalorder %s26, 3
      %p90 = por %p88, %p89
      %p91 = scmp.ne.s32.totalorder %s82, %s83
      %p92 = scmp.eq.s32.totalorder %s26, 0
      %p93 = por %p91, %p92
      %p94 = scmp.ne.s32.totalorder %s82, %s83
      %p95 = scmp.eq.s32.totalorder %s27, 3
      %p96 = por %p94, %p95
      %p98 = scmp.ne.s32.totalorder %s83, %s97
      %p99 = scmp.eq.s32.totalorder %s27, 0
      %p100 = por %p98, %p99
      %s101 = smul.u32 %s28, 2
      %s102 = sadd.s32 %s101, %s29
      %s103 = smul.u32 %s47, 2
      %s104 = sadd.s32 %s103, %s43
      %s105 = ssub.s32 %s102, %s104
      %p106 = scmp.eq.s32.totalorder %s105, 0
      %s108 = sadd.s32 %s107, 1
      %s109 = scalar_select %p106, %s107, %s108
      %p112 = pneg %p106
      %p113 = scmp.eq.s32.totalorder %s21, 3
      %p114 = por %p112, %p113
      %p115 = scmp.ne.s32.totalorder %s107, %s110
      %p116 = scmp.eq.s32.totalorder %s21, 0
      %p117 = por %p115, %p116
      %p118 = scmp.ne.s32.totalorder %s107, %s110
      %p119 = scmp.eq.s32.totalorder %s26, 3
      %p120 = por %p118, %p119
      %p121 = scmp.ne.s32.totalorder %s110, %s111
      %p122 = scmp.eq.s32.totalorder %s26, 0
      %p123 = por %p121, %p122
      %p124 = scmp.ne.s32.totalorder %s110, %s111
      %p125 = scmp.eq.s32.totalorder %s27, 3
      %p126 = por %p124, %p125
      %p128 = scmp.ne.s32.totalorder %s111, %s127
      %p129 = scmp.eq.s32.totalorder %s27, 0
      %p130 = por %p128, %p129
      %s131 = ssub.s32 %s28, %s47
      %p132 = scmp.eq.s32.totalorder %s131, 0
      %s134 = sadd.s32 %s133, 1
      %s135 = scalar_select %p132, %s133, %s134
      %p138 = pneg %p132
      %p139 = scmp.eq.s32.totalorder %s21, 3
      %p140 = por %p138, %p139
      %p141 = scmp.ne.s32.totalorder %s133, %s136
      %p142 = scmp.eq.s32.totalorder %s21, 0
      %p143 = por %p141, %p142
      %p144 = scmp.ne.s32.totalorder %s133, %s136
      %p145 = scmp.eq.s32.totalorder %s26, 3
      %p146 = por %p144, %p145
      %p147 = scmp.ne.s32.totalorder %s136, %s137
      %p148 = scmp.eq.s32.totalorder %s26, 0
      %p149 = por %p147, %p148
      %p150 = scmp.ne.s32.totalorder %s136, %s137
      %p151 = scmp.eq.s32.totalorder %s27, 3
      %p152 = por %p150, %p151
      %p154 = scmp.ne.s32.totalorder %s137, %s153
      %p155 = scmp.eq.s32.totalorder %s27, 0
      %p156 = por %p154, %p155
      %s157 = ssub.s32 %s28, %s47
      %p158 = scmp.eq.s32.totalorder %s157, 0
      %s160 = sadd.s32 %s159, 1
      %s161 = scalar_select %p158, %s159, %s160
      %p164 = pneg %p158
      %p165 = scmp.eq.s32.totalorder %s21, 3
      %p166 = por %p164, %p165
      %p167 = scmp.ne.s32.totalorder %s159, %s162
      %p168 = scmp.eq.s32.totalorder %s21, 0
      %p169 = por %p167, %p168
      %p170 = scmp.ne.s32.totalorder %s159, %s162
      %p171 = scmp.eq.s32.totalorder %s26, 3
      %p172 = por %p170, %p171
      %p173 = scmp.ne.s32.totalorder %s162, %s163
      %p174 = scmp.eq.s32.totalorder %s26, 0
      %p175 = por %p173, %p174
      %p176 = scmp.ne.s32.totalorder %s162, %s163
      %p177 = scmp.eq.s32.totalorder %s27, 3
      %p178 = por %p176, %p177
      %p180 = scmp.ne.s32.totalorder %s163, %s179
      %p181 = scmp.eq.s32.totalorder %s27, 0
      %p182 = por %p180, %p181
      %p183 = scmp.le.s32.totalorder 1, %s21
      %p184 = scmp.lt.s32.totalorder %s21, 5
      %p185 = pnand %p183, %p184
      %p186 = pneg %p185
      // Predicated region
      $region9: #{tpu_custom_call.1} parent=5 // pred_check
        _
      $region10: #{tpu_custom_call.1} parent=5 // pred_check_branch
        %188 = sbr.rel (%p185) target = $region12
      $region11: #{tpu_custom_call.1} parent=5 // pred_region
        %s189 = ssub.s32 %s21, 1
        // Predicated region
        $region13: #{tpu_custom_call.1} parent=11 // pred_check
          %p190 = pneg %p93
        $region14: #{tpu_custom_call.1} parent=11 // pred_check_branch
          %192 = sbr.rel (%p190) target = $region16
        $region15: #{tpu_custom_call.1} parent=11 // pred_region
          %s194 = ssub.s32 1024, 1024
          %195 = vsyncadd [#allocation6], %s194
          %s196 = sshll.u32 [#allocation5], 4
          %s197 = int_to_ptr.vmem [resolvable:$true] %s196
          %202 = dma.hbm_to_vmem [thread:$0]  %s1, 1024, %s197, [#allocation6], 64, 64, 4
        $region16: #{tpu_custom_call.1} parent=11 // pred_fallthru
          _
      $region12: #{tpu_custom_call.1} parent=5 // pred_fallthru
        _
      %p203 = scmp.lt.s32.totalorder %s21, 4
      // Predicated region
      $region17: #{tpu_custom_call.1} parent=5 // pred_check
        %p204 = pneg %p203
      $region18: #{tpu_custom_call.1} parent=5 // pred_check_branch
        %206 = sbr.rel (%p204) target = $region20
      $region19: #{tpu_custom_call.1} parent=5 // pred_region
        // Predicated region
        $region21: #{tpu_custom_call.1} parent=19 // pred_check
          %p207 = pneg %p66
        $region22: #{tpu_custom_call.1} parent=19 // pred_check_branch
          %209 = sbr.rel (%p207) target = $region24
        $region23: #{tpu_custom_call.1} parent=19 // pred_region
          %s210 = sand.u32 %s56, 1
          %s211 = scalar_lea.sflag [#allocation3], %s210
          %s212 = sand.u32 %s56, 1
          %s213 = smul.addr %s212, 16
          %s214 = scalar_lea.vmem [#allocation2], %s213
          %s215 = smul.u32 %s28, 2
          %s216 = sadd.s32 %s215, %s29
          %s217 = smul.u32 4, %s216
          %s219 = ssub.s32 256, 256
          %220 = vsyncadd %s211, %s219
          %s221 = sadd.s32 %s30, %s217
          %s222 = smul.addr %s221, 64
          %s223 = scalar_lea.hbm %s0, %s222
          %s224 = sshll.u32 %s214, 4
          %s225 = int_to_ptr.vmem [resolvable:$true] %s224
          %230 = dma.hbm_to_vmem [thread:$0]  %s223, 256, %s225, %s211, 64, 64, 4
        $region24: #{tpu_custom_call.1} parent=19 // pred_fallthru
          _
      $region20: #{tpu_custom_call.1} parent=5 // pred_fallthru
        _
      %p231 = scmp.le.s32.totalorder 1, %s21
      %p232 = scmp.lt.s32.totalorder %s21, 5
      %p233 = pnand %p231, %p232
      %p234 = pneg %p233
      // Predicated region
      $region25: #{tpu_custom_call.1} parent=5 // pred_check
        _
      $region26: #{tpu_custom_call.1} parent=5 // pred_check_branch
        %236 = sbr.rel (%p233) target = $region28
      $region27: #{tpu_custom_call.1} parent=5 // pred_region
        %s237 = ssub.s32 %s21, 1
        %s238 = sand.u32 %s59, 1
        %s239 = scalar_lea.sflag [#allocation3], %s238
        %s240 = sand.u32 %s59, 1
        %s241 = smul.addr %s240, 16
        %s242 = scalar_lea.vmem [#allocation2], %s241
        // Predicated region
        $region29: #{tpu_custom_call.1} parent=27 // pred_check
          %p243 = pneg %p72
        $region30: #{tpu_custom_call.1} parent=27 // pred_check_branch
          %245 = sbr.rel (%p243) target = $region32
        $region31: #{tpu_custom_call.1} parent=27 // pred_region
          %246 = dma.done %s239, 256
        $region32: #{tpu_custom_call.1} parent=27 // pred_fallthru
          _
        // Predicated region
        $region33: #{tpu_custom_call.1} parent=27 // pred_check
          %p247 = pneg %p93
        $region34: #{tpu_custom_call.1} parent=27 // pred_check_branch
          %249 = sbr.rel (%p247) target = $region36
        $region35: #{tpu_custom_call.1} parent=27 // pred_region
          %250 = dma.done [#allocation6], 1024
        $region36: #{tpu_custom_call.1} parent=27 // pred_fallthru
          _
        %s251 = sand.u32 %s59, 1
        %s252 = scalar_lea.sflag [#allocation3], %s251
        %s253 = sand.u32 %s59, 1
        %s254 = smul.addr %s253, 16
        %s255 = scalar_lea.vmem [#allocation2], %s254
        %p256 = pneg %p72
        %p257 = pneg %p69
        %p258 = pneg %p93
        %p259 = pneg %p90
        %p260 = pneg %p123
        %p261 = pneg %p120
        %s262 = sand.u32 %s110, 1
        %s263 = scalar_lea.sflag [#allocation4], %s262
        %s264 = sand.u32 %s110, 1
        %s265 = smul.addr %s264, 32
        %s266 = scalar_lea.vmem [#allocation7], %s265
        %p267 = pneg %p149
        %p268 = pneg %p146
        %s269 = sand.u32 %s26, 1
        %s270 = scalar_lea.sflag [#allocation9], %s269
        %s271 = sand.u32 %s136, 1
        %s272 = scalar_lea.vmem [#allocation8], %s271
        %p273 = pneg %p175
        %p274 = pneg %p172
        %s275 = sand.u32 %s26, 1
        %s276 = scalar_lea.sflag [#allocation9], %s275
        %s277 = sand.u32 %s162, 1
        %s278 = scalar_lea.vmem [#allocation10], %s277
        %s279 = smul.u32 %s31, 2
        %s280 = sadd.s32 %s279, %s32
        %s281 = smul.u32 4, %s280
        %s282 = smul.u32 %s31, 2
        %s283 = sadd.s32 %s282, %s32
        %s284 = smul.u32 4, %s283
        %v286 = vld [vmem:[%s242] sm:$0xf]
        %v287 = vld [vmem:[%s242 + $0x4] sm:$0xf]
        %v288 = vld [vmem:[%s242 + $0x8] sm:$0xf]
        %v289 = vld [vmem:[%s242 + $0xc] sm:$0xf]
        %v290 = vld [vmem:[#allocation5] sm:$0xf]
        %v291 = vld [vmem:[#allocation5 + $0x4] sm:$0xf]
        %v292 = vld [vmem:[#allocation5 + $0x8] sm:$0xf]
        %v293 = vld [vmem:[#allocation5 + $0xc] sm:$0xf]
        %v294 = vld [vmem:[#allocation5 + $0x10] sm:$0xf]
        %v295 = vld [vmem:[#allocation5 + $0x14] sm:$0xf]
        %v296 = vld [vmem:[#allocation5 + $0x18] sm:$0xf]
        %v297 = vld [vmem:[#allocation5 + $0x1c] sm:$0xf]
        %v298 = vld [vmem:[#allocation5 + $0x20] sm:$0xf]
        %v299 = vld [vmem:[#allocation5 + $0x24] sm:$0xf]
        %v300 = vld [vmem:[#allocation5 + $0x28] sm:$0xf]
        %v301 = vld [vmem:[#allocation5 + $0x2c] sm:$0xf]
        %v302 = vld [vmem:[#allocation5 + $0x30] sm:$0xf]
        %v303 = vld [vmem:[#allocation5 + $0x34] sm:$0xf]
        %v304 = vld [vmem:[#allocation5 + $0x38] sm:$0xf]
        %v305 = vld [vmem:[#allocation5 + $0x3c] sm:$0xf]
        %v310 = vunpack.c.l.b16 %v286
        %v311 = vunpack.c.l.b16 %v287
        %v312 = vunpack.c.l.b16 %v288
        %v313 = vunpack.c.l.b16 %v289
        %v314 = vpack.c.b16 %v311, %v310
        %v315 = vpack.c.b16 %v313, %v312
        %v334 = vunpack.c.l.b16 %v290
        %v335 = vunpack.c.l.b16 %v291
        %v336 = vunpack.c.l.b16 %v292
        %v337 = vunpack.c.l.b16 %v293
        %v338 = vunpack.c.l.b16 %v294
        %v339 = vunpack.c.l.b16 %v295
        %v340 = vunpack.c.l.b16 %v296
        %v341 = vunpack.c.l.b16 %v297
        %v342 = vunpack.c.l.b16 %v298
        %v343 = vunpack.c.l.b16 %v299
        %v344 = vunpack.c.l.b16 %v300
        %v345 = vunpack.c.l.b16 %v301
        %v346 = vunpack.c.l.b16 %v302
        %v347 = vunpack.c.l.b16 %v303
        %v348 = vunpack.c.l.b16 %v304
        %v349 = vunpack.c.l.b16 %v305
        %v350 = vpack.c.b16 %v335, %v334
        %v351 = vpack.c.b16 %v337, %v336
        %v352 = vpack.c.b16 %v339, %v338
        %v353 = vpack.c.b16 %v341, %v340
        %v354 = vpack.c.b16 %v343, %v342
        %v355 = vpack.c.b16 %v345, %v344
        %v356 = vpack.c.b16 %v347, %v346
        %v357 = vpack.c.b16 %v349, %v348
        %366 = vmatprep.subr.bf16.mxu0 0
        %367 = vmatpush1.bf16.msra.mxu0 %v357
        %368 = vmatprep.subr.bf16.mxu0 0
        %369 = vmatpush1.bf16.msra.mxu0 %v356
        %370 = vmatprep.subr.bf16.mxu0 0
        %371 = vmatpush1.bf16.msra.mxu0 %v355
        %372 = vmatprep.subr.bf16.mxu0 0
        %373 = vmatpush1.bf16.msra.mxu0 %v354
        %374 = vmatprep.subr.bf16.mxu0 0
        %375 = vmatpush1.bf16.msra.mxu0 %v353
        %376 = vmatprep.subr.bf16.mxu0 0
        %377 = vmatpush1.bf16.msra.mxu0 %v352
        %378 = vmatprep.subr.bf16.mxu0 0
        %379 = vmatpush1.bf16.msra.mxu0 %v351
        %380 = vmatprep.subr.bf16.mxu0 0
        %381 = vmatpush1.bf16.msra.mxu0 %v350
        %382 = vmatprep.subr.bf16.mxu0 0
        %383 = vmatpush2.bf16.msra.mxu0 0
        %384 = vmatprep.subr.bf16.mxu0 0
        %385 = vmatpush2.bf16.msra.mxu0 0
        %386 = vmatprep.subr.bf16.mxu0 0
        %387 = vmatpush2.bf16.msra.mxu0 0
        %388 = vmatprep.subr.bf16.mxu0 0
        %389 = vmatpush2.bf16.msra.mxu0 0
        %390 = vmatprep.subr.bf16.mxu0 0
        %391 = vmatpush2.bf16.msra.mxu0 0
        %392 = vmatprep.subr.bf16.mxu0 0
        %393 = vmatpush2.bf16.msra.mxu0 0
        %394 = vmatprep.subr.bf16.mxu0 0
        %395 = vmatpush2.bf16.msra.mxu0 0
        %396 = vmatprep.subr.bf16.mxu0 0
        %397 = vmatpush2.bf16.msra.mxu0 0
        %398 = vmatprep.mubr.bf16.mxu0 0
        %399 = vmatmul.mubr.bf16.gmra.mxu0 %v314
        %v400 = vpop.f32.mrf.mxu0
        %v401 = vadd.f32 0.0, %v400
        %v402 = vpop.f32.mrf.mxu0
        %v403 = vpop.f32.mrf.mxu0
        %v404 = vadd.f32 0.0, %v403
        %v405 = vpop.f32.mrf.mxu0
        %406 = vmatprep.mubr.bf16.mxu0 0
        %407 = vmatmul.mubr.bf16.gmra.mxu0 %v315
        %v408 = vpop.f32.mrf.mxu0
        %v409 = vadd.f32 0.0, %v408
        %v410 = vpop.f32.mrf.mxu0
        %v411 = vpop.f32.mrf.mxu0
        %v412 = vadd.f32 0.0, %v411
        %v413 = vpop.f32.mrf.mxu0
        %414 = vdwg.mxu0
        %p415 = scmp.eq.s32.totalorder %s33, 0
        // Predicated region
        $region37: #{tpu_custom_call.1} parent=27 // pred_check
          %p416 = pneg %p415
        $region38: #{tpu_custom_call.1} parent=27 // pred_check_branch
          %418 = sbr.rel (%p416) target = $region40
        $region39: #{tpu_custom_call.1} parent=27 // pred_region
          %419 = vst [vmem:[%s266] sm:$0xff] %v401
          %420 = vst [vmem:[%s266 + $0x8] sm:$0xff] %v404
          %421 = vst [vmem:[%s266 + $0x10] sm:$0xff] %v409
          %422 = vst [vmem:[%s266 + $0x18] sm:$0xff] %v412
        $region40: #{tpu_custom_call.1} parent=27 // pred_fallthru
          _
        %p423 = scmp.gt.s32.totalorder %s33, 0
        // Predicated region
        $region41: #{tpu_custom_call.1} parent=27 // pred_check
          %p424 = pneg %p423
        $region42: #{tpu_custom_call.1} parent=27 // pred_check_branch
          %426 = sbr.rel (%p424) target = $region44
        $region43: #{tpu_custom_call.1} parent=27 // pred_region
          %v427 = vld [vmem:[%s266] sm:$0xff]
          %v428 = vld [vmem:[%s266 + $0x8] sm:$0xff]
          %v429 = vld [vmem:[%s266 + $0x10] sm:$0xff]
          %v430 = vld [vmem:[%s266 + $0x18] sm:$0xff]
          %v431 = vadd.f32 %v427, %v401
          %v432 = vadd.f32 %v428, %v404
          %v433 = vadd.f32 %v429, %v409
          %v434 = vadd.f32 %v430, %v412
          %435 = vst [vmem:[%s266] sm:$0xff] %v431
          %436 = vst [vmem:[%s266 + $0x8] sm:$0xff] %v432
          %437 = vst [vmem:[%s266 + $0x10] sm:$0xff] %v433
          %438 = vst [vmem:[%s266 + $0x18] sm:$0xff] %v434
        $region44: #{tpu_custom_call.1} parent=27 // pred_fallthru
          _
        %p439 = scmp.eq.s32.totalorder %s32, 0
        %p440 = pnand %p439, %p415
        %p441 = pneg %p440
        // Predicated region
        $region45: #{tpu_custom_call.1} parent=27 // pred_check
          _
        $region46: #{tpu_custom_call.1} parent=27 // pred_check_branch
          %443 = sbr.rel (%p440) target = $region48
        $region47: #{tpu_custom_call.1} parent=27 // pred_region
          %444 = vst [vmem:[%s272] sm:$0x1] 0.0
          %445 = vst [vmem:[%s278] sm:$0x1] 0.0
        $region48: #{tpu_custom_call.1} parent=27 // pred_fallthru
          _
        // Predicated region
        $region49: #{tpu_custom_call.1} parent=27 // pred_check
          %p446 = pneg %p415
        $region50: #{tpu_custom_call.1} parent=27 // pred_check_branch
          %448 = sbr.rel (%p446) target = $region52
        $region51: #{tpu_custom_call.1} parent=27 // pred_region
          %v449 = vld [vmem:[%s266] sm:$0xff]
          %v450 = vld [vmem:[%s266 + $0x8] sm:$0xff]
          %v451 = vld [vmem:[%s266 + $0x10] sm:$0xff]
          %v452 = vld [vmem:[%s266 + $0x18] sm:$0xff]
          %v453 = vld [vmem:[%s272] sm:$0x1]
          %v454 = vadd.f32 %v449, %v450
          %v455 = vadd.f32 %v454, %v451
          %v456 = vadd.f32 %v455, %v452
          %v457 = vrot.slane %v456, 4
          %v458 = vadd.f32 %v456, %v457
          %v459 = vrot.slane %v458, 2
          %v460 = vadd.f32 %v458, %v459
          %v461 = vrot.slane %v460, 1
          %v462 = vadd.f32 %v460, %v461
          %v463 = vadd.f32 %v453, %v462
          %464 = vst [vmem:[%s272] sm:$0x1] %v463
          %v465 = vld [vmem:[%s278] sm:$0x1]
          %v466 = vmul.f32 %v449, %v449
          %v467 = vmul.f32 %v450, %v450
          %v468 = vmul.f32 %v451, %v451
          %v469 = vmul.f32 %v452, %v452
          %v470 = vadd.f32 %v466, %v467
          %v471 = vadd.f32 %v470, %v468
          %v472 = vadd.f32 %v471, %v469
          %v473 = vrot.slane %v472, 4
          %v474 = vadd.f32 %v472, %v473
          %v475 = vrot.slane %v474, 2
          %v476 = vadd.f32 %v474, %v475
          %v477 = vrot.slane %v476, 1
          %v478 = vadd.f32 %v476, %v477
          %v479 = vadd.f32 %v465, %v478
          %480 = vst [vmem:[%s278] sm:$0x1] %v479
        $region52: #{tpu_custom_call.1} parent=27 // pred_fallthru
          _
        %s481 = sand.u32 %s110, 1
        %s482 = scalar_lea.sflag [#allocation4], %s481
        %s483 = sand.u32 %s110, 1
        %s484 = smul.addr %s483, 32
        %s485 = scalar_lea.vmem [#allocation7], %s484
        %s486 = sand.u32 %s26, 1
        %s487 = scalar_lea.sflag [#allocation9], %s486
        %s488 = sand.u32 %s136, 1
        %s489 = scalar_lea.vmem [#allocation8], %s488
        %s490 = sand.u32 %s26, 1
        %s491 = scalar_lea.sflag [#allocation9], %s490
        %s492 = sand.u32 %s162, 1
        %s493 = scalar_lea.vmem [#allocation10], %s492
        // Predicated region
        $region53: #{tpu_custom_call.1} parent=27 // pred_check
          %p494 = pneg %p120
        $region54: #{tpu_custom_call.1} parent=27 // pred_check_branch
          %496 = sbr.rel (%p494) target = $region56
        $region55: #{tpu_custom_call.1} parent=27 // pred_region
          %s497 = smul.u32 %s31, 2
          %s498 = sadd.s32 %s497, %s32
          %s499 = smul.u32 4, %s498
          %s501 = ssub.s32 512, 512
          %502 = vsyncadd %s482, %s501
          %s503 = smul.addr %s499, 128
          %s504 = scalar_lea.hbm %s2, %s503
          %s505 = sshll.u32 %s485, 4
          %s506 = int_to_ptr.vmem [resolvable:$true] %s505
          %511 = dma.vmem_to_hbm [thread:$0]  %s506, 512, %s504, %s482, 128, 128, 8
        $region56: #{tpu_custom_call.1} parent=27 // pred_fallthru
          _
        // Predicated region
        $region57: #{tpu_custom_call.1} parent=27 // pred_check
          %p512 = pneg %p146
        $region58: #{tpu_custom_call.1} parent=27 // pred_check_branch
          %514 = sbr.rel (%p512) target = $region60
        $region59: #{tpu_custom_call.1} parent=27 // pred_region
          %s516 = ssub.s32 16, 16
          %517 = vsyncadd %s487, %s516
          %s518 = smul.addr %s31, 16
          %s519 = scalar_lea.hbm %s3, %s518
          %s521 = sshll.u32 %s489, 4
          %s522 = int_to_ptr.vmem [resolvable:$true] %s521
          %524 = dma.vmem_to_hbm [thread:$0]  %s522, 16, %s519, %s487
        $region60: #{tpu_custom_call.1} parent=27 // pred_fallthru
          _
        // Predicated region
        $region61: #{tpu_custom_call.1} parent=27 // pred_check
          %p525 = pneg %p172
        $region62: #{tpu_custom_call.1} parent=27 // pred_check_branch
          %527 = sbr.rel (%p525) target = $region64
        $region63: #{tpu_custom_call.1} parent=27 // pred_region
          %s529 = ssub.s32 16, 16
          %530 = vsyncadd %s491, %s529
          %s531 = smul.addr %s31, 16
          %s532 = scalar_lea.hbm %s4, %s531
          %s534 = sshll.u32 %s493, 4
          %s535 = int_to_ptr.vmem [resolvable:$true] %s534
          %537 = dma.vmem_to_hbm [thread:$0]  %s535, 16, %s532, %s491
        $region64: #{tpu_custom_call.1} parent=27 // pred_fallthru
          _
      $region28: #{tpu_custom_call.1} parent=5 // pred_fallthru
        _
      %p538 = scmp.le.s32.totalorder 2, %s21
      // Predicated region
      $region65: #{tpu_custom_call.1} parent=5 // pred_check
        %p539 = pneg %p538
      $region66: #{tpu_custom_call.1} parent=5 // pred_check_branch
        %541 = sbr.rel (%p539) target = $region68
      $region67: #{tpu_custom_call.1} parent=5 // pred_region
        %s542 = ssub.s32 %s21, 2
        // Predicated region
        $region69: #{tpu_custom_call.1} parent=67 // pred_check
          %p543 = pneg %p126
        $region70: #{tpu_custom_call.1} parent=67 // pred_check_branch
          %545 = sbr.rel (%p543) target = $region72
        $region71: #{tpu_custom_call.1} parent=67 // pred_region
          %s546 = sand.u32 %s111, 1
          %s547 = scalar_lea.sflag [#allocation4], %s546
          %s548 = sand.u32 %s111, 1
          %s549 = smul.addr %s548, 32
          %s550 = scalar_lea.vmem [#allocation7], %s549
          %551 = dma.done %s547, 512
        $region72: #{tpu_custom_call.1} parent=67 // pred_fallthru
          _
        // Predicated region
        $region73: #{tpu_custom_call.1} parent=67 // pred_check
          %p552 = pneg %p152
        $region74: #{tpu_custom_call.1} parent=67 // pred_check_branch
          %554 = sbr.rel (%p552) target = $region76
        $region75: #{tpu_custom_call.1} parent=67 // pred_region
          %s555 = sand.u32 %s27, 1
          %s556 = scalar_lea.sflag [#allocation9], %s555
          %s557 = sand.u32 %s137, 1
          %s558 = scalar_lea.vmem [#allocation8], %s557
          %559 = dma.done %s556, 16
        $region76: #{tpu_custom_call.1} parent=67 // pred_fallthru
          _
        // Predicated region
        $region77: #{tpu_custom_call.1} parent=67 // pred_check
          %p560 = pneg %p178
        $region78: #{tpu_custom_call.1} parent=67 // pred_check_branch
          %562 = sbr.rel (%p560) target = $region80
        $region79: #{tpu_custom_call.1} parent=67 // pred_region
          %s563 = sand.u32 %s27, 1
          %s564 = scalar_lea.sflag [#allocation9], %s563
          %s565 = sand.u32 %s163, 1
          %s566 = scalar_lea.vmem [#allocation10], %s565
          %567 = dma.done %s564, 16
        $region80: #{tpu_custom_call.1} parent=67 // pred_fallthru
          _
      $region68: #{tpu_custom_call.1} parent=5 // pred_fallthru
        _
    $region6: #{tpu_custom_call.1} parent=1 // loop_footer
      %s25 = sadd.s32 1, %s21
    $region7: #{tpu_custom_call.1} parent=1 // loop_footer_branch
      %20 = sbr.rel target = $region3
    $region8: #{tpu_custom_call.1} parent=1 // loop_exit
      _
    %568 = vsyncpa [#allocation3], 1
    %s569 = scalar_lea.sflag [#allocation3], 1
    %570 = vsyncpa %s569, 1
    %571 = vsyncpa [#allocation6], 1
    %572 = vsyncpa [#allocation4], 1
    %s573 = scalar_lea.sflag [#allocation4], 1
    %574 = vsyncpa %s573, 1
    %575 = vsyncpa [#allocation9], 1
    %s576 = scalar_lea.sflag [#allocation9], 1
    %577 = vsyncpa %s576, 1

</llo_original>
